<compile_context>
chip_gen: v5e
topology: v5e:2x2
jax: 0.10.0
libtpu: 0.0.40
codegen_flags: <defaults>
</compile_context>

<pallas_src>
import functools

import jax
import jax.numpy as jnp
from jax.experimental import pallas as pl
from jax.experimental.pallas import tpu as pltpu


def _round_up(x, m):
    return ((x + m - 1) // m) * m


def _vmem_capacity_bytes():
    # Per-TensorCore VMEM: 128 MiB on v5e/v6e, 64 MiB on v7x.  Fall back to the
    # conservative 64 MiB if the query is unavailable so the budget is safe everywhere.
    try:
        return int(pltpu.get_tpu_info().vmem_capacity_bytes)
    except Exception:
        return 64 * 1024 * 1024


def _layernorm(y, gamma, beta, eps):
    # TF-style LayerNorm over the last dim (biased variance, eps inside the sqrt).
    u = jnp.mean(y, axis=-1, keepdims=True)
    c = y - u
    s = jnp.mean(c * c, axis=-1, keepdims=True)
    yn = c * jax.lax.rsqrt(s + eps)          # rsqrt -> EUP slot (free vs VALU divide)
    return gamma * yn + beta


# --------------------------------------------------------------------------- kernels


def _output_kernel(h_ref, x_ref, w_ref, b_ref, g_ref, be_ref, o_ref, *, eps, matmul_dtype):
    # Resident-weight path: whole (K, N) weight lives in VMEM; rows are streamed.
    h = h_ref[...]
    w = w_ref[...]
    if matmul_dtype is not None:
        h = h.astype(matmul_dtype)
        w = w.astype(matmul_dtype)
    y = jnp.dot(h, w, preferred_element_type=jnp.float32)
    # Dropout: module evaluated in inference mode -> identity.
    # TODO(synk): training-mode dropout (stateful PRNG mask) not implemented.
    y = y + b_ref[...].astype(jnp.float32) + x_ref[...].astype(jnp.float32)
    out = _layernorm(y, g_ref[...].astype(jnp.float32), be_ref[...].astype(jnp.float32), eps)
    o_ref[...] = out.astype(o_ref.dtype)


def _output_kernel_ksplit(h_ref, x_ref, w_ref, b_ref, g_ref, be_ref, o_ref, acc_ref,
                          *, eps, matmul_dtype):
    # K-split path: weight streamed in (tile_k, N) slices, f32 accumulator in scratch.
    k = pl.program_id(1)

    @pl.when(k == 0)
    def _():
        acc_ref[...] = jnp.zeros_like(acc_ref)

    h = h_ref[...]
    w = w_ref[...]
    if matmul_dtype is not None:
        h = h.astype(matmul_dtype)
        w = w.astype(matmul_dtype)
    acc_ref[...] += jnp.dot(h, w, preferred_element_type=jnp.float32)

    @pl.when(k == pl.num_programs(1) - 1)
    def _():
        y = acc_ref[...] + b_ref[...].astype(jnp.float32) + x_ref[...].astype(jnp.float32)
        out = _layernorm(y, g_ref[...].astype(jnp.float32), be_ref[...].astype(jnp.float32), eps)
        o_ref[...] = out.astype(o_ref.dtype)


# --------------------------------------------------------------------------- tiling


def _derive_tile_m(M, per_row_bytes, resident_bytes, vmem_budget):
    headroom = 2 * 1024 * 1024
    avail = vmem_budget - resident_bytes - headroom
    tm = max(8, avail // per_row_bytes)
    tm = min(tm, 1024, _round_up(M, 8))
    if tm >= 128:
        tm = (tm // 128) * 128   # 128-aligned row tiles keep the v5e 4x128 MXU fully fed
    else:
        tm = max(8, (tm // 8) * 8)
    return int(tm)


def _choose_tile_k(K, target=512):
    # Largest multiple of 128 <= target that exactly divides K (no garbage-padded
    # reduction columns); None if K is not 128-divisible.
    if K % 128 != 0:
        return None
    best = 128
    t = 128
    while t <= min(K, target):
        if K % t == 0:
            best = t
        t += 128
    return best


# --------------------------------------------------------------------------- wrapper


def output_forward(hidden_states, input_tensor, w_t, b, gamma, beta, *,
                   eps=1e-12, matmul_dtype=None, tile_m=None, tile_k=None,
                   force_k_split=False, single_buffer_consts=True,
                   vmem_budget_fraction=0.65):
    """Fused dense -> dropout(inference) -> residual -> TF LayerNorm.

    hidden_states: [B, S, K]  (K = intermediate_size)
    input_tensor:  [B, S, N]  (N = hidden_size)
    w_t:           [K, N]     (transposed vs PyTorch's [N, K] Linear weight)
    b / gamma / beta: [N]
    Returns [B, S, N] in hidden_states.dtype.

    For best HBM traffic, pass hidden_states / w_t in bf16 directly (matmul_dtype=None
    then feeds the MXU natively in bf16 with f32 accumulation).  matmul_dtype only
    changes the in-kernel operand dtype (useful if inputs must stay f32 in HBM).
    """
    B, S, K = hidden_states.shape
    N = input_tensor.shape[-1]
    M = B * S

    dtb_h = jnp.dtype(hidden_states.dtype).itemsize
    dtb_x = jnp.dtype(input_tensor.dtype).itemsize
    dtb_w = jnp.dtype(w_t.dtype).itemsize
    out_dtype = hidden_states.dtype
    dtb_o = jnp.dtype(out_dtype).itemsize

    h2 = hidden_states.reshape(M, K)
    x2 = input_tensor.reshape(M, N)
    b2 = b.reshape(1, N)
    g2 = gamma.reshape(1, N)
    be2 = beta.reshape(1, N)

    # Per-generation VMEM budget (v5e/v6e: 128 MiB, v7x: 64 MiB per TensorCore).
    vmem_cap = _vmem_capacity_bytes()
    vmem_budget = int(vmem_cap * vmem_budget_fraction)
    small_consts = 3 * N * 4 * 2 + 4096          # bias / gamma / beta + slack

    # Decide whether the (K, N) weight can stay resident or must be K-split.
    w_bytes = K * N * dtb_w
    weight_budget = vmem_budget // 2
    use_k_split = force_k_split or (w_bytes > weight_budget)
    tk = None
    if use_k_split:
        tk = tile_k if tile_k is not None else _choose_tile_k(K)
        if tk is None or K % tk != 0 or (tk % 128 != 0 and tk != K):
            use_k_split = False                  # cannot split cleanly -> resident weight
        else:
            tk = int(tk)

    cost = pl.CostEstimate(
        flops=2 * M * N * K,
        transcendentals=M,                       # one rsqrt per row
        bytes_accessed=M * K * dtb_h + M * N * (dtb_x + dtb_o) + K * N * dtb_w + 3 * N * 4,
    )

    def _run_resident(single_buffer):
        # Weight resident in VMEM: single-buffered if possible, else the footprint doubles
        # and tile_m is re-derived accordingly.
        resident = (w_bytes if single_buffer else 2 * w_bytes) + small_consts
        per_row = 2 * K * dtb_h + 2 * N * dtb_x + 2 * N * dtb_o + 4 * N * 4  # + f32 temps
        tm = tile_m if tile_m is not None else _derive_tile_m(M, per_row, resident, vmem_budget)
        tm = max(8, min(_round_up(int(tm), 8), _round_up(M, 8)))
        kw = dict(pipeline_mode=pl.Buffered(1)) if single_buffer else {}
        grid = (pl.cdiv(M, tm),)
        return pl.pallas_call(
            functools.partial(_output_kernel, eps=eps, matmul_dtype=matmul_dtype),
            out_shape=jax.ShapeDtypeStruct((M, N), out_dtype),
            grid_spec=pltpu.PrefetchScalarGridSpec(
                num_scalar_prefetch=0,
                grid=grid,
                in_specs=[
                    pl.BlockSpec((tm, K), lambda i: (i, 0)),        # hidden_states rows
                    pl.BlockSpec((tm, N), lambda i: (i, 0)),        # residual rows
                    pl.BlockSpec((K, N), lambda i: (0, 0), **kw),   # weight (resident)
                    pl.BlockSpec((1, N), lambda i: (0, 0), **kw),   # dense bias
                    pl.BlockSpec((1, N), lambda i: (0, 0), **kw),   # LN weight
                    pl.BlockSpec((1, N), lambda i: (0, 0), **kw),   # LN bias
                ],
                out_specs=pl.BlockSpec((tm, N), lambda i: (i, 0)),
            ),
            compiler_params=pltpu.CompilerParams(
                dimension_semantics=("parallel",),
                vmem_limit_bytes=vmem_budget,
            ),
            cost_estimate=cost,
        )(h2, x2, w_t, b2, g2, be2)

    def _run_ksplit(single_buffer):
        # Weight streamed in (tk, N) slices; f32 accumulator held in VMEM scratch.
        per_row = 2 * tk * dtb_h + 2 * N * dtb_x + 2 * N * dtb_o + N * 4 + 4 * N * 4
        resident = 2 * tk * N * dtb_w + small_consts
        tm = tile_m if tile_m is not None else _derive_tile_m(M, per_row, resident, vmem_budget)
        tm = max(8, min(_round_up(int(tm), 8), _round_up(M, 8)))
        kw = dict(pipeline_mode=pl.Buffered(1)) if single_buffer else {}
        grid = (pl.cdiv(M, tm), K // tk)         # reduction (K) axis last
        return pl.pallas_call(
            functools.partial(_output_kernel_ksplit, eps=eps, matmul_dtype=matmul_dtype),
            out_shape=jax.ShapeDtypeStruct((M, N), out_dtype),
            grid_spec=pltpu.PrefetchScalarGridSpec(
                num_scalar_prefetch=0,
                grid=grid,
                in_specs=[
                    pl.BlockSpec((tm, tk), lambda i, k: (i, k)),       # hidden_states tile
                    pl.BlockSpec((tm, N), lambda i, k: (i, 0)),        # residual rows
                    pl.BlockSpec((tk, N), lambda i, k: (k, 0)),        # weight slice (streamed)
                    pl.BlockSpec((1, N), lambda i, k: (0, 0), **kw),   # dense bias
                    pl.BlockSpec((1, N), lambda i, k: (0, 0), **kw),   # LN weight
                    pl.BlockSpec((1, N), lambda i, k: (0, 0), **kw),   # LN bias
                ],
                out_specs=pl.BlockSpec((tm, N), lambda i, k: (i, 0)),
                scratch_shapes=[pltpu.VMEM((tm, N), jnp.float32)],
            ),
            compiler_params=pltpu.CompilerParams(
                dimension_semantics=("parallel", "arbitrary"),
                vmem_limit_bytes=vmem_budget,
            ),
            cost_estimate=cost,
        )(h2, x2, w_t, b2, g2, be2)

    runner = _run_ksplit if use_k_split else _run_resident
    if single_buffer_consts:
        try:
            out2d = runner(True)
        except Exception:
            # Buffered(1) rejected: retry with default double-buffered constants at a
            # tile_m re-derived for the larger resident footprint (never same-size silent fallback).
            out2d = runner(False)
    else:
        out2d = runner(False)

    return out2d.reshape(B, S, N)


# --------------------------------------------------------------------------- reference


def _reference(hidden_states, input_tensor, w_t, b, gamma, beta, eps=1e-12):
    y = jnp.einsum("bsk,kn->bsn", hidden_states.astype(jnp.float32),
                   w_t.astype(jnp.float32)) + b.astype(jnp.float32)
    y = y + input_tensor.astype(jnp.float32)
    u = jnp.mean(y, axis=-1, keepdims=True)
    s = jnp.mean((y - u) ** 2, axis=-1, keepdims=True)
    yn = (y - u) / jnp.sqrt(s + eps)
    return gamma.astype(jnp.float32) * yn + beta.astype(jnp.float32)


if __name__ == "__main__":
    # Small config consistent with the module's forward:
    #   config.intermediate_size = 256, config.hidden_size = 128, eps = 1e-12
    # (lane-aligned feature dims so output stores are unmasked / lane-dense).
    B, S = 2, 8
    INTERMEDIATE, HIDDEN = 256, 128
    EPS = 1e-12

    key = jax.random.PRNGKey(0)
    k1, k2, k3, k4 = jax.random.split(key, 4)

    hidden_states = jax.random.normal(k1, (B, S, INTERMEDIATE), dtype=jnp.float32)
    input_tensor = jax.random.normal(k2, (B, S, HIDDEN), dtype=jnp.float32)
    # PyTorch Linear weight is (hidden, intermediate); we keep the transpose (K, N).
    w_t = 0.02 * jax.random.normal(k3, (INTERMEDIATE, HIDDEN), dtype=jnp.float32)
    b = 0.01 * jax.random.normal(k4, (HIDDEN,), dtype=jnp.float32)
    gamma = jnp.ones((HIDDEN,), dtype=jnp.float32)   # LayerNorm weight
    beta = jnp.zeros((HIDDEN,), dtype=jnp.float32)   # LayerNorm bias

    ref = _reference(hidden_states, input_tensor, w_t, b, gamma, beta, eps=EPS)

    # 1) f32 resident-weight path (exact-precision check).
    out_f32 = jax.block_until_ready(
        output_forward(hidden_states, input_tensor, w_t, b, gamma, beta, eps=EPS))
    assert out_f32.shape == (B, S, HIDDEN)
    assert jnp.allclose(out_f32, ref, atol=1e-5, rtol=1e-5), "f32 path mismatch vs reference"

    # 2) bf16-fed MXU path (the perf path on all generations): bf16 operands in HBM,
    #    f32 accumulation + f32 LayerNorm epilogue inside the kernel.
    out_bf16 = jax.block_until_ready(
        output_forward(hidden_states.astype(jnp.bfloat16),
                       input_tensor.astype(jnp.bfloat16),
                       w_t.astype(jnp.bfloat16), b, gamma, beta, eps=EPS))
    assert out_bf16.dtype == jnp.bfloat16
    assert jnp.allclose(out_bf16.astype(jnp.float32), ref, atol=5e-2, rtol=5e-2), \
        "bf16 path mismatch vs reference"

    # 3) K-split accumulator path (used automatically when the (K, N) weight exceeds the
    #    per-TC weight budget, e.g. large-intermediate configs on 64 MiB v7x) — forced
    #    here at a small tile_k for correctness validation.
    out_ks = jax.block_until_ready(
        output_forward(hidden_states, input_tensor, w_t, b, gamma, beta, eps=EPS,
                       force_k_split=True, tile_k=128))
    assert jnp.allclose(out_ks, ref, atol=1e-5, rtol=1e-5), "K-split path mismatch vs reference"

    print("KERNEL_OK")
</pallas_src>

<mosaic_0001>
module attributes {stable_mosaic.version = 11 : i64} {
  func.func @_output_kernel(%arg0: i32, %arg1: memref<16x256xf32, #tpu.memory_space<vmem>>, %arg2: memref<16x128xf32, #tpu.memory_space<vmem>>, %arg3: memref<256x128xf32, #tpu.memory_space<vmem>>, %arg4: memref<1x128xf32, #tpu.memory_space<vmem>>, %arg5: memref<1x128xf32, #tpu.memory_space<vmem>>, %arg6: memref<1x128xf32, #tpu.memory_space<vmem>>, %arg7: memref<16x128xf32, #tpu.memory_space<vmem>>) attributes {dimension_semantics = [#tpu.dimension_semantics<parallel>], iteration_bounds = array<i64: 1>, scalar_prefetch = 0 : i64, scratch_operands = 0 : i64, tpu.core_type = #tpu.core_type<tc>, window_params = [{transform_indices = @transform_0, window_bounds = array<i64: 16, 256>}, {transform_indices = @transform_1, window_bounds = array<i64: 16, 128>}, {pipeline_mode = #tpu.pipeline_mode<synchronous>, transform_indices = @transform_2, window_bounds = array<i64: 256, 128>}, {pipeline_mode = #tpu.pipeline_mode<synchronous>, transform_indices = @transform_3, window_bounds = array<i64: 1, 128>}, {pipeline_mode = #tpu.pipeline_mode<synchronous>, transform_indices = @transform_4, window_bounds = array<i64: 1, 128>}, {pipeline_mode = #tpu.pipeline_mode<synchronous>, transform_indices = @transform_5, window_bounds = array<i64: 1, 128>}, {transform_indices = @transform_6, window_bounds = array<i64: 16, 128>}]} {
    %c0 = arith.constant 0 : index
    %c0_0 = arith.constant 0 : index
    %0 = vector.load %arg1[%c0, %c0_0] : memref<16x256xf32, #tpu.memory_space<vmem>>, vector<16x256xf32>
    %c0_1 = arith.constant 0 : index
    %c0_2 = arith.constant 0 : index
    %1 = vector.load %arg3[%c0_1, %c0_2] : memref<256x128xf32, #tpu.memory_space<vmem>>, vector<256x128xf32>
    %cst = arith.constant dense<0.000000e+00> : vector<16x128xf32>
    %2 = tpu.matmul %0, %1, %cst {dimension_numbers = #tpu.dot_dimension_numbers<[1], [0], [0], [1], [0, 0, 1, 1], [], []>} : vector<16x256xf32>, vector<256x128xf32>, vector<16x128xf32> -> vector<16x128xf32>
    %c0_3 = arith.constant 0 : index
    %c0_4 = arith.constant 0 : index
    %3 = vector.load %arg4[%c0_3, %c0_4] : memref<1x128xf32, #tpu.memory_space<vmem>>, vector<1x128xf32>
    %4 = vector.broadcast %3 : vector<1x128xf32> to vector<16x128xf32>
    %5 = arith.addf %2, %4 : vector<16x128xf32>
    %c0_5 = arith.constant 0 : index
    %c0_6 = arith.constant 0 : index
    %6 = vector.load %arg2[%c0_5, %c0_6] : memref<16x128xf32, #tpu.memory_space<vmem>>, vector<16x128xf32>
    %7 = arith.addf %5, %6 : vector<16x128xf32>
    %c0_7 = arith.constant 0 : index
    %c0_8 = arith.constant 0 : index
    %8 = vector.load %arg5[%c0_7, %c0_8] : memref<1x128xf32, #tpu.memory_space<vmem>>, vector<1x128xf32>
    %c0_9 = arith.constant 0 : index
    %c0_10 = arith.constant 0 : index
    %9 = vector.load %arg6[%c0_9, %c0_10] : memref<1x128xf32, #tpu.memory_space<vmem>>, vector<1x128xf32>
    %cst_11 = arith.constant dense<0.000000e+00> : vector<16xf32>
    %10 = vector.multi_reduction <add>, %7, %cst_11 [1] : vector<16x128xf32> to vector<16xf32>
    %11 = vector.shape_cast %10 : vector<16xf32> to vector<16x1xf32>
    %cst_12 = arith.constant 1.280000e+02 : f32
    %12 = vector.broadcast %cst_12 : f32 to vector<16x1xf32>
    %13 = arith.divf %11, %12 : vector<16x1xf32>
    %14 = vector.broadcast %13 : vector<16x1xf32> to vector<16x128xf32>
    %15 = arith.subf %7, %14 : vector<16x128xf32>
    %16 = arith.mulf %15, %15 : vector<16x128xf32>
    %cst_13 = arith.constant dense<0.000000e+00> : vector<16xf32>
    %17 = vector.multi_reduction <add>, %16, %cst_13 [1] : vector<16x128xf32> to vector<16xf32>
    %18 = vector.shape_cast %17 : vector<16xf32> to vector<16x1xf32>
    %cst_14 = arith.constant 1.280000e+02 : f32
    %19 = vector.broadcast %cst_14 : f32 to vector<16x1xf32>
    %20 = arith.divf %18, %19 : vector<16x1xf32>
    %cst_15 = arith.constant 9.99999996E-13 : f32
    %21 = vector.broadcast %cst_15 : f32 to vector<16x1xf32>
    %22 = arith.addf %20, %21 : vector<16x1xf32>
    %23 = math.rsqrt %22 : vector<16x1xf32>
    %24 = vector.broadcast %23 : vector<16x1xf32> to vector<16x128xf32>
    %25 = arith.mulf %15, %24 : vector<16x128xf32>
    %26 = vector.broadcast %8 : vector<1x128xf32> to vector<16x128xf32>
    %27 = arith.mulf %26, %25 : vector<16x128xf32>
    %28 = vector.broadcast %9 : vector<1x128xf32> to vector<16x128xf32>
    %29 = arith.addf %27, %28 : vector<16x128xf32>
    %c0_16 = arith.constant 0 : index
    %c0_17 = arith.constant 0 : index
    %30 = vector.load %arg7[%c0_16, %c0_17] : memref<16x128xf32, #tpu.memory_space<vmem>>, vector<16x128xf32>
    tpu.vector_store %arg7[%c0_16, %c0_17], %29 {strides = array<i32>} : memref<16x128xf32, #tpu.memory_space<vmem>>, vector<16x128xf32>,
    return
  }
  func.func @transform_0(%arg0: i32) -> (i32, i32) {
    %c0_i32 = arith.constant 0 : i32
    %c0_i32_0 = arith.constant 0 : i32
    return %arg0, %c0_i32 : i32, i32
  }
  func.func @transform_1(%arg0: i32) -> (i32, i32) {
    %c0_i32 = arith.constant 0 : i32
    %c0_i32_0 = arith.constant 0 : i32
    return %arg0, %c0_i32 : i32, i32
  }
  func.func @transform_2(%arg0: i32) -> (i32, i32) {
    %c0_i32 = arith.constant 0 : i32
    %c0_i32_0 = arith.constant 0 : i32
    %c0_i32_1 = arith.constant 0 : i32
    return %c0_i32, %c0_i32_0 : i32, i32
  }
  func.func @transform_3(%arg0: i32) -> (i32, i32) {
    %c0_i32 = arith.constant 0 : i32
    %c0_i32_0 = arith.constant 0 : i32
    %c0_i32_1 = arith.constant 0 : i32
    return %c0_i32, %c0_i32_0 : i32, i32
  }
  func.func @transform_4(%arg0: i32) -> (i32, i32) {
    %c0_i32 = arith.constant 0 : i32
    %c0_i32_0 = arith.constant 0 : i32
    %c0_i32_1 = arith.constant 0 : i32
    return %c0_i32, %c0_i32_0 : i32, i32
  }
  func.func @transform_5(%arg0: i32) -> (i32, i32) {
    %c0_i32 = arith.constant 0 : i32
    %c0_i32_0 = arith.constant 0 : i32
    %c0_i32_1 = arith.constant 0 : i32
    return %c0_i32, %c0_i32_0 : i32, i32
  }
  func.func @transform_6(%arg0: i32) -> (i32, i32) {
    %c0_i32 = arith.constant 0 : i32
    %c0_i32_0 = arith.constant 0 : i32
    return %arg0, %c0_i32 : i32, i32
  }
}

module attributes {stable_mosaic.version = 11 : i64} {
  func.func @_output_kernel(%arg0: i32, %arg1: memref<16x256xf32, #tpu.memory_space<vmem>>, %arg2: memref<16x128xf32, #tpu.memory_space<vmem>>, %arg3: memref<256x128xf32, #tpu.memory_space<vmem>>, %arg4: memref<1x128xf32, #tpu.memory_space<vmem>>, %arg5: memref<1x128xf32, #tpu.memory_space<vmem>>, %arg6: memref<1x128xf32, #tpu.memory_space<vmem>>, %arg7: memref<16x128xf32, #tpu.memory_space<vmem>>) attributes {dimension_semantics = [#tpu.dimension_semantics<parallel>], iteration_bounds = array<i64: 1>, scalar_prefetch = 0 : i64, scratch_operands = 0 : i64, tpu.core_type = #tpu.core_type<tc>, window_params = [{transform_indices = @transform_0, window_bounds = array<i64: 16, 256>}, {transform_indices = @transform_1, window_bounds = array<i64: 16, 128>}, {pipeline_mode = #tpu.pipeline_mode<synchronous>, transform_indices = @transform_2, window_bounds = array<i64: 256, 128>}, {pipeline_mode = #tpu.pipeline_mode<synchronous>, transform_indices = @transform_3, window_bounds = array<i64: 1, 128>}, {pipeline_mode = #tpu.pipeline_mode<synchronous>, transform_indices = @transform_4, window_bounds = array<i64: 1, 128>}, {pipeline_mode = #tpu.pipeline_mode<synchronous>, transform_indices = @transform_5, window_bounds = array<i64: 1, 128>}, {transform_indices = @transform_6, window_bounds = array<i64: 16, 128>}]} {
    %c0 = arith.constant 0 : index
    %c0_0 = arith.constant 0 : index
    %0 = vector.load %arg1[%c0, %c0_0] : memref<16x256xf32, #tpu.memory_space<vmem>>, vector<16x256xf32>
    %c0_1 = arith.constant 0 : index
    %c0_2 = arith.constant 0 : index
    %1 = vector.load %arg3[%c0_1, %c0_2] : memref<256x128xf32, #tpu.memory_space<vmem>>, vector<256x128xf32>
    %cst = arith.constant dense<0.000000e+00> : vector<16x128xf32>
    %2 = tpu.matmul %0, %1, %cst {dimension_numbers = #tpu.dot_dimension_numbers<[1], [0], [0], [1], [0, 0, 1, 1], [], []>} : vector<16x256xf32>, vector<256x128xf32>, vector<16x128xf32> -> vector<16x128xf32>
    %c0_3 = arith.constant 0 : index
    %c0_4 = arith.constant 0 : index
    %3 = vector.load %arg4[%c0_3, %c0_4] : memref<1x128xf32, #tpu.memory_space<vmem>>, vector<1x128xf32>
    %4 = vector.broadcast %3 : vector<1x128xf32> to vector<16x128xf32>
    %5 = arith.addf %2, %4 : vector<16x128xf32>
    %c0_5 = arith.constant 0 : index
    %c0_6 = arith.constant 0 : index
    %6 = vector.load %arg2[%c0_5, %c0_6] : memref<16x128xf32, #tpu.memory_space<vmem>>, vector<16x128xf32>
    %7 = arith.addf %5, %6 : vector<16x128xf32>
    %c0_7 = arith.constant 0 : index
    %c0_8 = arith.constant 0 : index
    %8 = vector.load %arg5[%c0_7, %c0_8] : memref<1x128xf32, #tpu.memory_space<vmem>>, vector<1x128xf32>
    %c0_9 = arith.constant 0 : index
    %c0_10 = arith.constant 0 : index
    %9 = vector.load %arg6[%c0_9, %c0_10] : memref<1x128xf32, #tpu.memory_space<vmem>>, vector<1x128xf32>
    %cst_11 = arith.constant dense<0.000000e+00> : vector<16xf32>
    %10 = vector.multi_reduction <add>, %7, %cst_11 [1] : vector<16x128xf32> to vector<16xf32>
    %11 = vector.shape_cast %10 : vector<16xf32> to vector<16x1xf32>
    %cst_12 = arith.constant 1.280000e+02 : f32
    %12 = vector.broadcast %cst_12 : f32 to vector<16x1xf32>
    %13 = arith.divf %11, %12 : vector<16x1xf32>
    %14 = vector.broadcast %13 : vector<16x1xf32> to vector<16x128xf32>
    %15 = arith.subf %7, %14 : vector<16x128xf32>
    %16 = arith.mulf %15, %15 : vector<16x128xf32>
    %cst_13 = arith.constant dense<0.000000e+00> : vector<16xf32>
    %17 = vector.multi_reduction <add>, %16, %cst_13 [1] : vector<16x128xf32> to vector<16xf32>
    %18 = vector.shape_cast %17 : vector<16xf32> to vector<16x1xf32>
    %cst_14 = arith.constant 1.280000e+02 : f32
    %19 = vector.broadcast %cst_14 : f32 to vector<16x1xf32>
    %20 = arith.divf %18, %19 : vector<16x1xf32>
    %cst_15 = arith.constant 9.99999996E-13 : f32
    %21 = vector.broadcast %cst_15 : f32 to vector<16x1xf32>
    %22 = arith.addf %20, %21 : vector<16x1xf32>
    %23 = math.rsqrt %22 : vector<16x1xf32>
    %24 = vector.broadcast %23 : vector<16x1xf32> to vector<16x128xf32>
    %25 = arith.mulf %15, %24 : vector<16x128xf32>
    %26 = vector.broadcast %8 : vector<1x128xf32> to vector<16x128xf32>
    %27 = arith.mulf %26, %25 : vector<16x128xf32>
    %28 = vector.broadcast %9 : vector<1x128xf32> to vector<16x128xf32>
    %29 = arith.addf %27, %28 : vector<16x128xf32>
    %c0_16 = arith.constant 0 : index
    %c0_17 = arith.constant 0 : index
    %30 = vector.load %arg7[%c0_16, %c0_17] : memref<16x128xf32, #tpu.memory_space<vmem>>, vector<16x128xf32>
    tpu.vector_store %arg7[%c0_16, %c0_17], %29 {strides = array<i32>} : memref<16x128xf32, #tpu.memory_space<vmem>>, vector<16x128xf32>,
    return
  }
  func.func @transform_0(%arg0: i32) -> (i32, i32) {
    %c0_i32 = arith.constant 0 : i32
    %c0_i32_0 = arith.constant 0 : i32
    return %arg0, %c0_i32 : i32, i32
  }
  func.func @transform_1(%arg0: i32) -> (i32, i32) {
    %c0_i32 = arith.constant 0 : i32
    %c0_i32_0 = arith.constant 0 : i32
    return %arg0, %c0_i32 : i32, i32
  }
  func.func @transform_2(%arg0: i32) -> (i32, i32) {
    %c0_i32 = arith.constant 0 : i32
    %c0_i32_0 = arith.constant 0 : i32
    %c0_i32_1 = arith.constant 0 : i32
    return %c0_i32, %c0_i32_0 : i32, i32
  }
  func.func @transform_3(%arg0: i32) -> (i32, i32) {
    %c0_i32 = arith.constant 0 : i32
    %c0_i32_0 = arith.constant 0 : i32
    %c0_i32_1 = arith.constant 0 : i32
    return %c0_i32, %c0_i32_0 : i32, i32
  }
  func.func @transform_4(%arg0: i32) -> (i32, i32) {
    %c0_i32 = arith.constant 0 : i32
    %c0_i32_0 = arith.constant 0 : i32
    %c0_i32_1 = arith.constant 0 : i32
    return %c0_i32, %c0_i32_0 : i32, i32
  }
  func.func @transform_5(%arg0: i32) -> (i32, i32) {
    %c0_i32 = arith.constant 0 : i32
    %c0_i32_0 = arith.constant 0 : i32
    %c0_i32_1 = arith.constant 0 : i32
    return %c0_i32, %c0_i32_0 : i32, i32
  }
  func.func @transform_6(%arg0: i32) -> (i32, i32) {
    %c0_i32 = arith.constant 0 : i32
    %c0_i32_0 = arith.constant 0 : i32
    return %arg0, %c0_i32 : i32, i32
  }
}

</mosaic_0001>

<llo_original>
// kernel: tpu_custom_call.1
$region0: #{tpu_custom_call.1}
  #allocation0 [shape = 'u32[]', space=smem, size = 0x4, offset = 0x4, fixed_abs, tag = 'smem constant byte address 0x4 - core index']
  #allocation1 [shape = 'u32[72,128]{1,0:T(1,128)}', space=vmem, size = 0x9000, scoped, tag = 'internal scratch']
  %s0 = inlined_call_operand.hbm [shape: f32[16,256], index: 0, kind: input, shape index: {}]
  %s1 = inlined_call_operand.hbm [shape: f32[16,128], index: 1, kind: input, shape index: {}]
  %s2 = inlined_call_operand.hbm [shape: f32[256,128], index: 2, kind: input, shape index: {}]
  %s3 = inlined_call_operand.vmem [shape: f32[1,128], index: 3, kind: input, shape index: {}]
  %s4 = inlined_call_operand.vmem [shape: f32[1,128], index: 4, kind: input, shape index: {}]
  %s5 = inlined_call_operand.vmem [shape: f32[1,128], index: 5, kind: input, shape index: {}]
  %s6 = inlined_call_operand.hbm [shape: f32[16,128], index: 6, kind: output, shape index: {}]
  %s7 = sld [smem:[#allocation0]]
  $region46: #{tpu_custom_call.1} parent=0
    _
  %s9 = ssub.s32 1, %s7
  %s10 = scalar_select 0, %s9, %s7
  $region1: #{tpu_custom_call.1} parent=0
    #allocation2 [shape = 'u8[16384]{0}', space=vmem, size = 0x4000, scoped, tag = 'input window, operand 0, single buffered']
    #allocation3 [shape = 's32[1]{0}', space=sflag, size = 0x4, scoped, tag = 'scoped memory for tpu_custom_call.1']
    #allocation4 [shape = 's32[1]{0}', space=sflag, size = 0x4, scoped, tag = 'scoped memory for tpu_custom_call.1']
    #allocation5 [shape = 'u8[8192]{0}', space=vmem, size = 0x2000, scoped, tag = 'input window, operand 1, single buffered']
    #allocation6 [shape = 's32[1]{0}', space=sflag, size = 0x4, scoped, tag = 'scoped memory for tpu_custom_call.1']
    #allocation7 [shape = 'u8[131072]{0}', space=vmem, size = 0x20000, scoped, tag = 'input window, operand 2, single buffered']
    #allocation8 [shape = 'u8[8192]{0}', space=vmem, size = 0x2000, scoped, tag = 'output window, operand 0, single buffered']
    %11 = vsyncpa [#allocation3], 0
    %12 = vsyncpa [#allocation6], 0
    %13 = vsyncpa [#allocation4], 0
    // Predicated region
    $region2: #{tpu_custom_call.1} parent=1 // pred_check
      _
    $region3: #{tpu_custom_call.1} parent=1 // pred_check_branch
      %15 = sbr.rel (0) target = $region5
    $region4: #{tpu_custom_call.1} parent=1 // pred_region
      %17 = vsyncadd [#allocation3], 0
      %s18 = sshll.u32 %s0, 4
      %s19 = int_to_ptr.hbm [resolvable:$true] %s18
      %s20 = sshll.u32 [#allocation2], 4
      %s21 = int_to_ptr.vmem [resolvable:$true] %s20
      %26 = dma.hbm_to_vmem [thread:$0]  %s19, 512, %s21, [#allocation3], 256, 256, 16
    $region5: #{tpu_custom_call.1} parent=1 // pred_fallthru
      _
    // Predicated region
    $region6: #{tpu_custom_call.1} parent=1 // pred_check
      _
    $region7: #{tpu_custom_call.1} parent=1 // pred_check_branch
      %28 = sbr.rel (0) target = $region9
    $region8: #{tpu_custom_call.1} parent=1 // pred_region
      %30 = vsyncadd [#allocation6], 0
      %s31 = sshll.u32 %s1, 4
      %s32 = int_to_ptr.hbm [resolvable:$true] %s31
      %s33 = sshll.u32 [#allocation5], 4
      %s34 = int_to_ptr.vmem [resolvable:$true] %s33
      %39 = dma.hbm_to_vmem [thread:$0]  %s32, 256, %s34, [#allocation6], 128, 128, 8
    $region9: #{tpu_custom_call.1} parent=1 // pred_fallthru
      _
    // Predicated region
    $region10: #{tpu_custom_call.1} parent=1 // pred_check
      _
    $region11: #{tpu_custom_call.1} parent=1 // pred_check_branch
      %41 = sbr.rel (0) target = $region13
    $region12: #{tpu_custom_call.1} parent=1 // pred_region
      %43 = vsyncadd [#allocation6], 0
      %s44 = sshll.u32 %s2, 4
      %s45 = int_to_ptr.hbm [resolvable:$true] %s44
      %s46 = sshll.u32 [#allocation7], 4
      %s47 = int_to_ptr.vmem [resolvable:$true] %s46
      %52 = dma.hbm_to_vmem [thread:$0]  %s45, 4096, %s47, [#allocation6], 128, 128, 8
    $region13: #{tpu_custom_call.1} parent=1 // pred_fallthru
      _
    // Predicated region
    $region14: #{tpu_custom_call.1} parent=1 // pred_check
      _
    $region15: #{tpu_custom_call.1} parent=1 // pred_check_branch
      %54 = sbr.rel (0) target = $region17
    $region16: #{tpu_custom_call.1} parent=1 // pred_region
      _
    $region17: #{tpu_custom_call.1} parent=1 // pred_fallthru
      _
    // Predicated region
    $region18: #{tpu_custom_call.1} parent=1 // pred_check
      _
    $region19: #{tpu_custom_call.1} parent=1 // pred_check_branch
      %56 = sbr.rel (0) target = $region21
    $region20: #{tpu_custom_call.1} parent=1 // pred_region
      _
    $region21: #{tpu_custom_call.1} parent=1 // pred_fallthru
      _
    // Predicated region
    $region22: #{tpu_custom_call.1} parent=1 // pred_check
      _
    $region23: #{tpu_custom_call.1} parent=1 // pred_check_branch
      %58 = sbr.rel (0) target = $region25
    $region24: #{tpu_custom_call.1} parent=1 // pred_region
      _
    $region25: #{tpu_custom_call.1} parent=1 // pred_fallthru
      _
    // Predicated region
    $region26: #{tpu_custom_call.1} parent=1 // pred_check
      _
    $region27: #{tpu_custom_call.1} parent=1 // pred_check_branch
      %60 = sbr.rel (0) target = $region29
    $region28: #{tpu_custom_call.1} parent=1 // pred_region
      %62 = dma.done [#allocation3], 512
    $region29: #{tpu_custom_call.1} parent=1 // pred_fallthru
      _
    // Predicated region
    $region30: #{tpu_custom_call.1} parent=1 // pred_check
      _
    $region31: #{tpu_custom_call.1} parent=1 // pred_check_branch
      %64 = sbr.rel (0) target = $region33
    $region32: #{tpu_custom_call.1} parent=1 // pred_region
      %66 = dma.done [#allocation6], 256
    $region33: #{tpu_custom_call.1} parent=1 // pred_fallthru
      _
    // Predicated region
    $region34: #{tpu_custom_call.1} parent=1 // pred_check
      _
    $region35: #{tpu_custom_call.1} parent=1 // pred_check_branch
      %68 = sbr.rel (0) target = $region37
    $region36: #{tpu_custom_call.1} parent=1 // pred_region
      %70 = dma.done [#allocation6], 4096
    $region37: #{tpu_custom_call.1} parent=1 // pred_fallthru
      _
    %v71 = vld [vmem:[#allocation2] sm:$0xff]
    %v72 = vld [vmem:[#allocation2 + $0x8] sm:$0xff]
    %v73 = vld [vmem:[#allocation2 + $0x10] sm:$0xff]
    %v74 = vld [vmem:[#allocation2 + $0x18] sm:$0xff]
    %v75 = vld [vmem:[#allocation7] sm:$0xff]
    %v76 = vld [vmem:[#allocation7 + $0x8] sm:$0xff]
    %v77 = vld [vmem:[#allocation7 + $0x10] sm:$0xff]
    %v78 = vld [vmem:[#allocation7 + $0x18] sm:$0xff]
    %v79 = vld [vmem:[#allocation7 + $0x20] sm:$0xff]
    %v80 = vld [vmem:[#allocation7 + $0x28] sm:$0xff]
    %v81 = vld [vmem:[#allocation7 + $0x30] sm:$0xff]
    %v82 = vld [vmem:[#allocation7 + $0x38] sm:$0xff]
    %v83 = vld [vmem:[#allocation7 + $0x40] sm:$0xff]
    %v84 = vld [vmem:[#allocation7 + $0x48] sm:$0xff]
    %v85 = vld [vmem:[#allocation7 + $0x50] sm:$0xff]
    %v86 = vld [vmem:[#allocation7 + $0x58] sm:$0xff]
    %v87 = vld [vmem:[#allocation7 + $0x60] sm:$0xff]
    %v88 = vld [vmem:[#allocation7 + $0x68] sm:$0xff]
    %v89 = vld [vmem:[#allocation7 + $0x70] sm:$0xff]
    %v90 = vld [vmem:[#allocation7 + $0x78] sm:$0xff]
    %v91 = vld [vmem:[#allocation7 + $0x80] sm:$0xff]
    %v92 = vld [vmem:[#allocation7 + $0x88] sm:$0xff]
    %v93 = vld [vmem:[#allocation7 + $0x90] sm:$0xff]
    %v94 = vld [vmem:[#allocation7 + $0x98] sm:$0xff]
    %v95 = vld [vmem:[#allocation7 + $0xa0] sm:$0xff]
    %v96 = vld [vmem:[#allocation7 + $0xa8] sm:$0xff]
    %v97 = vld [vmem:[#allocation7 + $0xb0] sm:$0xff]
    %v98 = vld [vmem:[#allocation7 + $0xb8] sm:$0xff]
    %v99 = vld [vmem:[#allocation7 + $0xc0] sm:$0xff]
    %v100 = vld [vmem:[#allocation7 + $0xc8] sm:$0xff]
    %v101 = vld [vmem:[#allocation7 + $0xd0] sm:$0xff]
    %v102 = vld [vmem:[#allocation7 + $0xd8] sm:$0xff]
    %v103 = vld [vmem:[#allocation7 + $0xe0] sm:$0xff]
    %v104 = vld [vmem:[#allocation7 + $0xe8] sm:$0xff]
    %v105 = vld [vmem:[#allocation7 + $0xf0] sm:$0xff]
    %v106 = vld [vmem:[#allocation7 + $0xf8] sm:$0xff]
    %v107 = vld [vmem:[%s3] sm:$0x1]
    %v109 = vperm.slane %v107, 0
    %111 = vmatpush.msra.mxu0 %v90
    %112 = vmatpush.msra.mxu0 %v89
    %113 = vmatpush.msra.mxu0 %v88
    %114 = vmatpush.msra.mxu0 %v87
    %115 = vmatpush.msra.mxu0 %v86
    %116 = vmatpush.msra.mxu0 %v85
    %117 = vmatpush.msra.mxu0 %v84
    %118 = vmatpush.msra.mxu0 %v83
    %119 = vmatpush.msra.mxu0 %v82
    %120 = vmatpush.msra.mxu0 %v81
    %121 = vmatpush.msra.mxu0 %v80
    %122 = vmatpush.msra.mxu0 %v79
    %123 = vmatpush.msra.mxu0 %v78
    %124 = vmatpush.msra.mxu0 %v77
    %125 = vmatpush.msra.mxu0 %v76
    %126 = vmatpush.msra.mxu0 %v75
    %127 = vmatmul.f32.gmra.mxu0 %v71
    %v128 = vpop.f32.mrf.mxu0
    %v129 = vadd.f32 %v109, %v128
    %130 = vmatmul.f32.gmra.mxu0 %v73
    %v131 = vpop.f32.mrf.mxu0
    %v132 = vadd.f32 %v109, %v131
    %133 = vdwg.mxu0
    %134 = vmatpush.msra.mxu0 %v106
    %135 = vmatpush.msra.mxu0 %v105
    %136 = vmatpush.msra.mxu0 %v104
    %137 = vmatpush.msra.mxu0 %v103
    %138 = vmatpush.msra.mxu0 %v102
    %139 = vmatpush.msra.mxu0 %v101
    %140 = vmatpush.msra.mxu0 %v100
    %141 = vmatpush.msra.mxu0 %v99
    %142 = vmatpush.msra.mxu0 %v98
    %143 = vmatpush.msra.mxu0 %v97
    %144 = vmatpush.msra.mxu0 %v96
    %145 = vmatpush.msra.mxu0 %v95
    %146 = vmatpush.msra.mxu0 %v94
    %147 = vmatpush.msra.mxu0 %v93
    %148 = vmatpush.msra.mxu0 %v92
    %149 = vmatpush.msra.mxu0 %v91
    %150 = vmatmul.f32.gmra.mxu0 %v72
    %v151 = vpop.f32.mrf.mxu0
    %v152 = vadd.f32 %v129, %v151
    %153 = vmatmul.f32.gmra.mxu0 %v74
    %v154 = vpop.f32.mrf.mxu0
    %v155 = vadd.f32 %v132, %v154
    %156 = vdwg.mxu0
    %v157 = vld [vmem:[#allocation5] sm:$0xff]
    %v158 = vld [vmem:[#allocation5 + $0x8] sm:$0xff]
    %v159 = vadd.f32 %v152, %v157
    %v160 = vadd.f32 %v155, %v158
    %v161 = vld [vmem:[%s4] sm:$0x1]
    %v162 = vld [vmem:[%s5] sm:$0x1]
    %163 = vadd.xlane.f32.xlu0 %v159
    %v164 = vpop.xlane.xlu0 %163
    %165 = vadd.xlane.f32.xlu0 %v160
    %v166 = vpop.xlane.xlu0 %165
    %v167 = vrcp.pop 128.0
    %v168 = vmul.f32 128.0, %v167
    %v169 = vsub.f32 1.0, %v168
    %v170 = vmul.f32 %v167, %v169
    %v171 = vadd.f32 %v167, %v170
    %vm172 = vweird.f32 %v167
    %v173 = vsel %vm172, %v167, %v171
    %v174 = vmul.f32 %v164, %v173
    %v175 = vmul.f32 %v166, %v173
    %v176 = vsub.f32 %v159, %v174
    %v177 = vsub.f32 %v160, %v175
    %v178 = vmul.f32 %v176, %v176
    %v179 = vmul.f32 %v177, %v177
    %180 = vadd.xlane.f32.xlu0 %v178
    %v181 = vpop.xlane.xlu0 %180
    %182 = vadd.xlane.f32.xlu0 %v179
    %v183 = vpop.xlane.xlu0 %182
    %v184 = vmul.f32 %v181, %v173
    %v185 = vmul.f32 %v183, %v173
    %v186 = vadd.f32 %v184, 1e-12
    %v187 = vadd.f32 %v185, 1e-12
    %v188 = vrsqrt.pop %v186
    %v189 = vmul.f32 %v188, %v186
    %v190 = vmul.f32 %v189, %v188
    %v191 = vmul.f32 0.5, %v190
    %v192 = vsub.f32 1.5, %v191
    %v193 = vmul.f32 %v188, %v192
    %vm194 = vweird.f32 %v186
    %vm195 = vweird.f32 %v188
    %vm196 = vmor %vm194, %vm195
    %v197 = vsel %vm196, %v188, %v193
    %v198 = vrsqrt.pop %v187
    %v199 = vmul.f32 %v198, %v187
    %v200 = vmul.f32 %v199, %v198
    %v201 = vmul.f32 0.5, %v200
    %v202 = vsub.f32 1.5, %v201
    %v203 = vmul.f32 %v198, %v202
    %vm204 = vweird.f32 %v187
    %vm205 = vweird.f32 %v198
    %vm206 = vmor %vm204, %vm205
    %v207 = vsel %vm206, %v198, %v203
    %v208 = vmul.f32 %v176, %v197
    %v209 = vmul.f32 %v177, %v207
    %v211 = vperm.slane %v161, 0
    %v213 = vmul.f32 %v211, %v208
    %v214 = vmul.f32 %v211, %v209
    %v216 = vperm.slane %v162, 0
    %v218 = vadd.f32 %v213, %v216
    %v219 = vadd.f32 %v214, %v216
    %220 = vst [vmem:[#allocation8] sm:$0xff] %v218
    %221 = vst [vmem:[#allocation8 + $0x8] sm:$0xff] %v219
    // Predicated region
    $region38: #{tpu_custom_call.1} parent=1 // pred_check
      _
    $region39: #{tpu_custom_call.1} parent=1 // pred_check_branch
      %223 = sbr.rel (0) target = $region41
    $region40: #{tpu_custom_call.1} parent=1 // pred_region
      %225 = vsyncadd [#allocation4], 0
      %s226 = sshll.u32 [#allocation8], 4
      %s227 = int_to_ptr.vmem [resolvable:$true] %s226
      %s228 = sshll.u32 %s6, 4
      %s229 = int_to_ptr.hbm [resolvable:$true] %s228
      %234 = dma.vmem_to_hbm [thread:$0]  %s227, 256, %s229, [#allocation4], 128, 128, 8
    $region41: #{tpu_custom_call.1} parent=1 // pred_fallthru
      _
    // Predicated region
    $region42: #{tpu_custom_call.1} parent=1 // pred_check
      _
    $region43: #{tpu_custom_call.1} parent=1 // pred_check_branch
      %236 = sbr.rel (0) target = $region45
    $region44: #{tpu_custom_call.1} parent=1 // pred_region
      %238 = dma.done [#allocation4], 256
    $region45: #{tpu_custom_call.1} parent=1 // pred_fallthru
      _
    %239 = vsyncpa [#allocation3], 1
    %240 = vsyncpa [#allocation6], 1
    %241 = vsyncpa [#allocation4], 1

// kernel: tpu_custom_call.1
$region0: #{tpu_custom_call.1}
  #allocation0 [shape = 'u32[]', space=smem, size = 0x4, offset = 0x4, fixed_abs, tag = 'smem constant byte address 0x4 - core index']
  #allocation1 [shape = 'u32[72,128]{1,0:T(1,128)}', space=vmem, size = 0x9000, scoped, tag = 'internal scratch']
  %s0 = inlined_call_operand.hbm [shape: f32[16,256], index: 0, kind: input, shape index: {}]
  %s1 = inlined_call_operand.hbm [shape: f32[16,128], index: 1, kind: input, shape index: {}]
  %s2 = inlined_call_operand.hbm [shape: f32[256,128], index: 2, kind: input, shape index: {}]
  %s3 = inlined_call_operand.vmem [shape: f32[1,128], index: 3, kind: input, shape index: {}]
  %s4 = inlined_call_operand.vmem [shape: f32[1,128], index: 4, kind: input, shape index: {}]
  %s5 = inlined_call_operand.vmem [shape: f32[1,128], index: 5, kind: input, shape index: {}]
  %s6 = inlined_call_operand.hbm [shape: f32[16,128], index: 6, kind: output, shape index: {}]
  %s7 = sld [smem:[#allocation0]]
  $region46: #{tpu_custom_call.1} parent=0
    _
  %s9 = ssub.s32 1, %s7
  %s10 = scalar_select 0, %s9, %s7
  $region1: #{tpu_custom_call.1} parent=0
    #allocation2 [shape = 'u8[16384]{0}', space=vmem, size = 0x4000, scoped, tag = 'input window, operand 0, single buffered']
    #allocation3 [shape = 's32[1]{0}', space=sflag, size = 0x4, scoped, tag = 'scoped memory for tpu_custom_call.1']
    #allocation4 [shape = 's32[1]{0}', space=sflag, size = 0x4, scoped, tag = 'scoped memory for tpu_custom_call.1']
    #allocation5 [shape = 'u8[8192]{0}', space=vmem, size = 0x2000, scoped, tag = 'input window, operand 1, single buffered']
    #allocation6 [shape = 's32[1]{0}', space=sflag, size = 0x4, scoped, tag = 'scoped memory for tpu_custom_call.1']
    #allocation7 [shape = 'u8[131072]{0}', space=vmem, size = 0x20000, scoped, tag = 'input window, operand 2, single buffered']
    #allocation8 [shape = 'u8[8192]{0}', space=vmem, size = 0x2000, scoped, tag = 'output window, operand 0, single buffered']
    %11 = vsyncpa [#allocation3], 0
    %12 = vsyncpa [#allocation6], 0
    %13 = vsyncpa [#allocation4], 0
    // Predicated region
    $region2: #{tpu_custom_call.1} parent=1 // pred_check
      _
    $region3: #{tpu_custom_call.1} parent=1 // pred_check_branch
      %15 = sbr.rel (0) target = $region5
    $region4: #{tpu_custom_call.1} parent=1 // pred_region
      %17 = vsyncadd [#allocation3], 0
      %s18 = sshll.u32 %s0, 4
      %s19 = int_to_ptr.hbm [resolvable:$true] %s18
      %s20 = sshll.u32 [#allocation2], 4
      %s21 = int_to_ptr.vmem [resolvable:$true] %s20
      %26 = dma.hbm_to_vmem [thread:$0]  %s19, 512, %s21, [#allocation3], 256, 256, 16
    $region5: #{tpu_custom_call.1} parent=1 // pred_fallthru
      _
    // Predicated region
    $region6: #{tpu_custom_call.1} parent=1 // pred_check
      _
    $region7: #{tpu_custom_call.1} parent=1 // pred_check_branch
      %28 = sbr.rel (0) target = $region9
    $region8: #{tpu_custom_call.1} parent=1 // pred_region
      %30 = vsyncadd [#allocation6], 0
      %s31 = sshll.u32 %s1, 4
      %s32 = int_to_ptr.hbm [resolvable:$true] %s31
      %s33 = sshll.u32 [#allocation5], 4
      %s34 = int_to_ptr.vmem [resolvable:$true] %s33
      %39 = dma.hbm_to_vmem [thread:$0]  %s32, 256, %s34, [#allocation6], 128, 128, 8
    $region9: #{tpu_custom_call.1} parent=1 // pred_fallthru
      _
    // Predicated region
    $region10: #{tpu_custom_call.1} parent=1 // pred_check
      _
    $region11: #{tpu_custom_call.1} parent=1 // pred_check_branch
      %41 = sbr.rel (0) target = $region13
    $region12: #{tpu_custom_call.1} parent=1 // pred_region
      %43 = vsyncadd [#allocation6], 0
      %s44 = sshll.u32 %s2, 4
      %s45 = int_to_ptr.hbm [resolvable:$true] %s44
      %s46 = sshll.u32 [#allocation7], 4
      %s47 = int_to_ptr.vmem [resolvable:$true] %s46
      %52 = dma.hbm_to_vmem [thread:$0]  %s45, 4096, %s47, [#allocation6], 128, 128, 8
    $region13: #{tpu_custom_call.1} parent=1 // pred_fallthru
      _
    // Predicated region
    $region14: #{tpu_custom_call.1} parent=1 // pred_check
      _
    $region15: #{tpu_custom_call.1} parent=1 // pred_check_branch
      %54 = sbr.rel (0) target = $region17
    $region16: #{tpu_custom_call.1} parent=1 // pred_region
      _
    $region17: #{tpu_custom_call.1} parent=1 // pred_fallthru
      _
    // Predicated region
    $region18: #{tpu_custom_call.1} parent=1 // pred_check
      _
    $region19: #{tpu_custom_call.1} parent=1 // pred_check_branch
      %56 = sbr.rel (0) target = $region21
    $region20: #{tpu_custom_call.1} parent=1 // pred_region
      _
    $region21: #{tpu_custom_call.1} parent=1 // pred_fallthru
      _
    // Predicated region
    $region22: #{tpu_custom_call.1} parent=1 // pred_check
      _
    $region23: #{tpu_custom_call.1} parent=1 // pred_check_branch
      %58 = sbr.rel (0) target = $region25
    $region24: #{tpu_custom_call.1} parent=1 // pred_region
      _
    $region25: #{tpu_custom_call.1} parent=1 // pred_fallthru
      _
    // Predicated region
    $region26: #{tpu_custom_call.1} parent=1 // pred_check
      _
    $region27: #{tpu_custom_call.1} parent=1 // pred_check_branch
      %60 = sbr.rel (0) target = $region29
    $region28: #{tpu_custom_call.1} parent=1 // pred_region
      %62 = dma.done [#allocation3], 512
    $region29: #{tpu_custom_call.1} parent=1 // pred_fallthru
      _
    // Predicated region
    $region30: #{tpu_custom_call.1} parent=1 // pred_check
      _
    $region31: #{tpu_custom_call.1} parent=1 // pred_check_branch
      %64 = sbr.rel (0) target = $region33
    $region32: #{tpu_custom_call.1} parent=1 // pred_region
      %66 = dma.done [#allocation6], 256
    $region33: #{tpu_custom_call.1} parent=1 // pred_fallthru
      _
    // Predicated region
    $region34: #{tpu_custom_call.1} parent=1 // pred_check
      _
    $region35: #{tpu_custom_call.1} parent=1 // pred_check_branch
      %68 = sbr.rel (0) target = $region37
    $region36: #{tpu_custom_call.1} parent=1 // pred_region
      %70 = dma.done [#allocation6], 4096
    $region37: #{tpu_custom_call.1} parent=1 // pred_fallthru
      _
    %v71 = vld [vmem:[#allocation2] sm:$0xff]
    %v72 = vld [vmem:[#allocation2 + $0x8] sm:$0xff]
    %v73 = vld [vmem:[#allocation2 + $0x10] sm:$0xff]
    %v74 = vld [vmem:[#allocation2 + $0x18] sm:$0xff]
    %v75 = vld [vmem:[#allocation7] sm:$0xff]
    %v76 = vld [vmem:[#allocation7 + $0x8] sm:$0xff]
    %v77 = vld [vmem:[#allocation7 + $0x10] sm:$0xff]
    %v78 = vld [vmem:[#allocation7 + $0x18] sm:$0xff]
    %v79 = vld [vmem:[#allocation7 + $0x20] sm:$0xff]
    %v80 = vld [vmem:[#allocation7 + $0x28] sm:$0xff]
    %v81 = vld [vmem:[#allocation7 + $0x30] sm:$0xff]
    %v82 = vld [vmem:[#allocation7 + $0x38] sm:$0xff]
    %v83 = vld [vmem:[#allocation7 + $0x40] sm:$0xff]
    %v84 = vld [vmem:[#allocation7 + $0x48] sm:$0xff]
    %v85 = vld [vmem:[#allocation7 + $0x50] sm:$0xff]
    %v86 = vld [vmem:[#allocation7 + $0x58] sm:$0xff]
    %v87 = vld [vmem:[#allocation7 + $0x60] sm:$0xff]
    %v88 = vld [vmem:[#allocation7 + $0x68] sm:$0xff]
    %v89 = vld [vmem:[#allocation7 + $0x70] sm:$0xff]
    %v90 = vld [vmem:[#allocation7 + $0x78] sm:$0xff]
    %v91 = vld [vmem:[#allocation7 + $0x80] sm:$0xff]
    %v92 = vld [vmem:[#allocation7 + $0x88] sm:$0xff]
    %v93 = vld [vmem:[#allocation7 + $0x90] sm:$0xff]
    %v94 = vld [vmem:[#allocation7 + $0x98] sm:$0xff]
    %v95 = vld [vmem:[#allocation7 + $0xa0] sm:$0xff]
    %v96 = vld [vmem:[#allocation7 + $0xa8] sm:$0xff]
    %v97 = vld [vmem:[#allocation7 + $0xb0] sm:$0xff]
    %v98 = vld [vmem:[#allocation7 + $0xb8] sm:$0xff]
    %v99 = vld [vmem:[#allocation7 + $0xc0] sm:$0xff]
    %v100 = vld [vmem:[#allocation7 + $0xc8] sm:$0xff]
    %v101 = vld [vmem:[#allocation7 + $0xd0] sm:$0xff]
    %v102 = vld [vmem:[#allocation7 + $0xd8] sm:$0xff]
    %v103 = vld [vmem:[#allocation7 + $0xe0] sm:$0xff]
    %v104 = vld [vmem:[#allocation7 + $0xe8] sm:$0xff]
    %v105 = vld [vmem:[#allocation7 + $0xf0] sm:$0xff]
    %v106 = vld [vmem:[#allocation7 + $0xf8] sm:$0xff]
    %v107 = vld [vmem:[%s3] sm:$0x1]
    %v109 = vperm.slane %v107, 0
    %111 = vmatpush.msra.mxu0 %v90
    %112 = vmatpush.msra.mxu0 %v89
    %113 = vmatpush.msra.mxu0 %v88
    %114 = vmatpush.msra.mxu0 %v87
    %115 = vmatpush.msra.mxu0 %v86
    %116 = vmatpush.msra.mxu0 %v85
    %117 = vmatpush.msra.mxu0 %v84
    %118 = vmatpush.msra.mxu0 %v83
    %119 = vmatpush.msra.mxu0 %v82
    %120 = vmatpush.msra.mxu0 %v81
    %121 = vmatpush.msra.mxu0 %v80
    %122 = vmatpush.msra.mxu0 %v79
    %123 = vmatpush.msra.mxu0 %v78
    %124 = vmatpush.msra.mxu0 %v77
    %125 = vmatpush.msra.mxu0 %v76
    %126 = vmatpush.msra.mxu0 %v75
    %127 = vmatmul.f32.gmra.mxu0 %v71
    %v128 = vpop.f32.mrf.mxu0
    %v129 = vadd.f32 %v109, %v128
    %130 = vmatmul.f32.gmra.mxu0 %v73
    %v131 = vpop.f32.mrf.mxu0
    %v132 = vadd.f32 %v109, %v131
    %133 = vdwg.mxu0
    %134 = vmatpush.msra.mxu0 %v106
    %135 = vmatpush.msra.mxu0 %v105
    %136 = vmatpush.msra.mxu0 %v104
    %137 = vmatpush.msra.mxu0 %v103
    %138 = vmatpush.msra.mxu0 %v102
    %139 = vmatpush.msra.mxu0 %v101
    %140 = vmatpush.msra.mxu0 %v100
    %141 = vmatpush.msra.mxu0 %v99
    %142 = vmatpush.msra.mxu0 %v98
    %143 = vmatpush.msra.mxu0 %v97
    %144 = vmatpush.msra.mxu0 %v96
    %145 = vmatpush.msra.mxu0 %v95
    %146 = vmatpush.msra.mxu0 %v94
    %147 = vmatpush.msra.mxu0 %v93
    %148 = vmatpush.msra.mxu0 %v92
    %149 = vmatpush.msra.mxu0 %v91
    %150 = vmatmul.f32.gmra.mxu0 %v72
    %v151 = vpop.f32.mrf.mxu0
    %v152 = vadd.f32 %v129, %v151
    %153 = vmatmul.f32.gmra.mxu0 %v74
    %v154 = vpop.f32.mrf.mxu0
    %v155 = vadd.f32 %v132, %v154
    %156 = vdwg.mxu0
    %v157 = vld [vmem:[#allocation5] sm:$0xff]
    %v158 = vld [vmem:[#allocation5 + $0x8] sm:$0xff]
    %v159 = vadd.f32 %v152, %v157
    %v160 = vadd.f32 %v155, %v158
    %v161 = vld [vmem:[%s4] sm:$0x1]
    %v162 = vld [vmem:[%s5] sm:$0x1]
    %163 = vadd.xlane.f32.xlu0 %v159
    %v164 = vpop.xlane.xlu0 %163
    %165 = vadd.xlane.f32.xlu0 %v160
    %v166 = vpop.xlane.xlu0 %165
    %v167 = vrcp.pop 128.0
    %v168 = vmul.f32 128.0, %v167
    %v169 = vsub.f32 1.0, %v168
    %v170 = vmul.f32 %v167, %v169
    %v171 = vadd.f32 %v167, %v170
    %vm172 = vweird.f32 %v167
    %v173 = vsel %vm172, %v167, %v171
    %v174 = vmul.f32 %v164, %v173
    %v175 = vmul.f32 %v166, %v173
    %v176 = vsub.f32 %v159, %v174
    %v177 = vsub.f32 %v160, %v175
    %v178 = vmul.f32 %v176, %v176
    %v179 = vmul.f32 %v177, %v177
    %180 = vadd.xlane.f32.xlu0 %v178
    %v181 = vpop.xlane.xlu0 %180
    %182 = vadd.xlane.f32.xlu0 %v179
    %v183 = vpop.xlane.xlu0 %182
    %v184 = vmul.f32 %v181, %v173
    %v185 = vmul.f32 %v183, %v173
    %v186 = vadd.f32 %v184, 1e-12
    %v187 = vadd.f32 %v185, 1e-12
    %v188 = vrsqrt.pop %v186
    %v189 = vmul.f32 %v188, %v186
    %v190 = vmul.f32 %v189, %v188
    %v191 = vmul.f32 0.5, %v190
    %v192 = vsub.f32 1.5, %v191
    %v193 = vmul.f32 %v188, %v192
    %vm194 = vweird.f32 %v186
    %vm195 = vweird.f32 %v188
    %vm196 = vmor %vm194, %vm195
    %v197 = vsel %vm196, %v188, %v193
    %v198 = vrsqrt.pop %v187
    %v199 = vmul.f32 %v198, %v187
    %v200 = vmul.f32 %v199, %v198
    %v201 = vmul.f32 0.5, %v200
    %v202 = vsub.f32 1.5, %v201
    %v203 = vmul.f32 %v198, %v202
    %vm204 = vweird.f32 %v187
    %vm205 = vweird.f32 %v198
    %vm206 = vmor %vm204, %vm205
    %v207 = vsel %vm206, %v198, %v203
    %v208 = vmul.f32 %v176, %v197
    %v209 = vmul.f32 %v177, %v207
    %v211 = vperm.slane %v161, 0
    %v213 = vmul.f32 %v211, %v208
    %v214 = vmul.f32 %v211, %v209
    %v216 = vperm.slane %v162, 0
    %v218 = vadd.f32 %v213, %v216
    %v219 = vadd.f32 %v214, %v216
    %220 = vst [vmem:[#allocation8] sm:$0xff] %v218
    %221 = vst [vmem:[#allocation8 + $0x8] sm:$0xff] %v219
    // Predicated region
    $region38: #{tpu_custom_call.1} parent=1 // pred_check
      _
    $region39: #{tpu_custom_call.1} parent=1 // pred_check_branch
      %223 = sbr.rel (0) target = $region41
    $region40: #{tpu_custom_call.1} parent=1 // pred_region
      %225 = vsyncadd [#allocation4], 0
      %s226 = sshll.u32 [#allocation8], 4
      %s227 = int_to_ptr.vmem [resolvable:$true] %s226
      %s228 = sshll.u32 %s6, 4
      %s229 = int_to_ptr.hbm [resolvable:$true] %s228
      %234 = dma.vmem_to_hbm [thread:$0]  %s227, 256, %s229, [#allocation4], 128, 128, 8
    $region41: #{tpu_custom_call.1} parent=1 // pred_fallthru
      _
    // Predicated region
    $region42: #{tpu_custom_call.1} parent=1 // pred_check
      _
    $region43: #{tpu_custom_call.1} parent=1 // pred_check_branch
      %236 = sbr.rel (0) target = $region45
    $region44: #{tpu_custom_call.1} parent=1 // pred_region
      %238 = dma.done [#allocation4], 256
    $region45: #{tpu_custom_call.1} parent=1 // pred_fallthru
      _
    %239 = vsyncpa [#allocation3], 1
    %240 = vsyncpa [#allocation6], 1
    %241 = vsyncpa [#allocation4], 1

</llo_original>
